<compile_context>
chip_gen: v7x
topology: tpu7x:2x2x1
jax: 0.10.0
libtpu: 0.0.40
codegen_flags: <defaults>
</compile_context>

<pallas_src>
import functools

import jax
import jax.numpy as jnp
from jax.experimental import pallas as pl
from jax.experimental.pallas import tpu as pltpu


def _round_up(n, m):
    return ((n + m - 1) // m) * m


# ---------------------------------------------------------------------------
# hardware queries (trace-time, guarded)
# ---------------------------------------------------------------------------

def _vmem_limit_bytes():
    default = 48 * 1024 * 1024
    try:
        cap = int(pltpu.get_tpu_info().vmem_capacity_bytes)
    except Exception:
        return default
    # leave headroom below the physical capacity (works for 64 and 128 MiB parts)
    return int(min(cap - 16 * 1024 * 1024, cap * 0.85))


def _num_tensorcores():
    try:
        kind = jax.devices()[0].device_kind.lower()
    except Exception:
        return 1
    # v7x exposes 2 TensorCores per chip; v5e/v6e have one.
    return 2 if ("v7" in kind or "tpu7" in kind) else 1


# ---------------------------------------------------------------------------
# kernels
# ---------------------------------------------------------------------------

def _ffn_kernel_resident(x_ref, w1_ref, b1_ref, w2_ref, b2_ref, o_ref):
    # y = relu(x @ W1 + b1) @ W2 + b2   (dropout = identity in eval mode)
    x = x_ref[...].astype(w1_ref.dtype)                     # cast in-kernel
    h = jnp.dot(x, w1_ref[...], preferred_element_type=jnp.float32)
    h = jnp.maximum(h + b1_ref[...], 0.0)                   # bias + ReLU, f32
    # TODO(synk): training-mode dropout would draw a keep-mask via
    # pltpu.prng_seed + pltpu.prng_random_bits; eval mode is identity.
    y = jnp.dot(h.astype(w2_ref.dtype), w2_ref[...],
                preferred_element_type=jnp.float32)
    o_ref[...] = (y + b2_ref[...]).astype(o_ref.dtype)


def _ffn_kernel_streamed(x_ref, w1_ref, b1_ref, w2_ref, b2_ref, o_ref, acc_ref):
    # d_ff is streamed in chunks; ReLU is per-column of h so chunking is exact.
    j = pl.program_id(1)

    @pl.when(j == 0)
    def _():
        acc_ref[...] = jnp.zeros_like(acc_ref)

    x = x_ref[...].astype(w1_ref.dtype)
    h = jnp.dot(x, w1_ref[...], preferred_element_type=jnp.float32)
    h = jnp.maximum(h + b1_ref[...], 0.0)
    acc_ref[...] += jnp.dot(h.astype(w2_ref.dtype), w2_ref[...],
                            preferred_element_type=jnp.float32)

    @pl.when(j == pl.num_programs(1) - 1)
    def _():
        o_ref[...] = (acc_ref[...] + b2_ref[...]).astype(o_ref.dtype)


# ---------------------------------------------------------------------------
# tiling heuristics
# ---------------------------------------------------------------------------

def _choose_row_tiling(N, tile_m, num_cores):
    tm = max(8, min(_round_up(tile_m, 8), _round_up(N, 8)))
    grid_m = pl.cdiv(N, tm)
    if num_cores > 1 and N > 8 * num_cores:
        # at least one (and a balanced number of) tile(s) per TensorCore
        grid_m = _round_up(max(grid_m, num_cores), num_cores)
    # balance rows across tiles instead of "full tile + mostly-padding tile"
    tm = max(8, _round_up(pl.cdiv(N, grid_m), 8))
    grid_m = pl.cdiv(N, tm)
    return tm, grid_m


def _choose_ff_tiling(dff_p, d_model, tm, itemsize, budget):
    """Largest d_ff chunk (multiple of 128 dividing dff_p) fitting the budget."""
    k = dff_p // 128
    for m in range(k, 0, -1):
        if k % m:
            continue
        tff = 128 * m
        bufs = 1 if m == k else 2                 # double-buffer when streaming
        w_bytes = bufs * 2 * d_model * tff * itemsize    # W1 + W2 chunks
        h_bytes = tm * tff * (4 + itemsize)              # f32 h + recast copy
        if w_bytes + h_bytes <= budget:
            return tff, dff_p // tff
    return 128, dff_p // 128


# ---------------------------------------------------------------------------
# parameter preparation (call ONCE, persist the result)
# ---------------------------------------------------------------------------

def prepare_ffn_params(w1, b1, w2, b2, compute_dtype=None):
    """Cast + lane-pad the weights once (persist these across calls).

    w1: [d_model, d_ff], w2: [d_ff, d_model] (pre-transposed vs PyTorch).
    compute_dtype defaults to bfloat16 for f32 params (native MXU operands);
    pass jnp.float32 for the tight-precision slow path.
    """
    d_model, d_ff = w1.shape
    if compute_dtype is None:
        compute_dtype = (jnp.bfloat16 if jnp.dtype(w1.dtype) == jnp.float32
                         else w1.dtype)
    mm_dtype = jnp.dtype(compute_dtype)
    dff_p = _round_up(d_ff, 128)
    pad_ff = dff_p - d_ff
    # zero-padding d_ff is exact: padded h columns are relu(0 + 0) = 0 and the
    # padded W2 rows are 0, so they contribute nothing to the output.
    w1p = jnp.pad(w1.astype(mm_dtype), ((0, 0), (0, pad_ff)))
    w2p = jnp.pad(w2.astype(mm_dtype), ((0, pad_ff), (0, 0)))
    b1p = jnp.pad(b1.astype(jnp.float32), (0, pad_ff)).reshape(1, dff_p)
    b2p = b2.astype(jnp.float32).reshape(1, d_model)
    return w1p, b1p, w2p, b2p


# ---------------------------------------------------------------------------
# apply
# ---------------------------------------------------------------------------

@functools.partial(jax.jit, static_argnames=("tile_m", "out_dtype",
                                             "vmem_limit", "num_cores",
                                             "max_resident_bytes"))
def _ffn_apply(x, w1p, b1p, w2p, b2p, *, tile_m, out_dtype, vmem_limit,
               num_cores, max_resident_bytes=None):
    B, S, d_model = x.shape
    dff_p = w1p.shape[1]
    N = B * S
    out_dtype = jnp.dtype(out_dtype)
    mm_itemsize = jnp.dtype(w1p.dtype).itemsize

    tm, grid_m = _choose_row_tiling(N, tile_m, num_cores)
    budget = (int(max_resident_bytes) if max_resident_bytes is not None
              else int(vmem_limit * 0.45))
    tff, grid_ff = _choose_ff_tiling(dff_p, d_model, tm, mm_itemsize, budget)

    x2d = x.reshape(N, d_model)          # native dtype, no padding

    cost = pl.CostEstimate(
        flops=4 * N * d_model * dff_p,
        transcendentals=0,
        bytes_accessed=(x2d.size * x2d.dtype.itemsize
                        + w1p.size * mm_itemsize + w2p.size * mm_itemsize
                        + b1p.size * 4 + b2p.size * 4
                        + N * d_model * out_dtype.itemsize))

    out_shape = jax.ShapeDtypeStruct((N, d_model), out_dtype)

    if grid_ff == 1:
        # fast path: weights fully VMEM-resident, single-buffered
        def resident(shape):
            return pl.BlockSpec(shape, lambda i: (0, 0),
                                pipeline_mode=pl.Buffered(1))

        out2d = pl.pallas_call(
            _ffn_kernel_resident,
            out_shape=out_shape,
            grid_spec=pltpu.PrefetchScalarGridSpec(
                num_scalar_prefetch=0,
                grid=(grid_m,),
                in_specs=[
                    pl.BlockSpec((tm, d_model), lambda i: (i, 0)),   # x tile
                    resident((d_model, dff_p)),                      # W1
                    resident((1, dff_p)),                            # b1
                    resident((dff_p, d_model)),                      # W2
                    resident((1, d_model)),                          # b2
                ],
                out_specs=pl.BlockSpec((tm, d_model), lambda i: (i, 0)),
            ),
            compiler_params=pltpu.CompilerParams(
                dimension_semantics=("parallel",),
                vmem_limit_bytes=vmem_limit),
            cost_estimate=cost,
        )(x2d, w1p, b1p, w2p, b2p)
    else:
        # streamed d_ff path (v7x / large weights): accumulate into f32 scratch
        out2d = pl.pallas_call(
            _ffn_kernel_streamed,
            out_shape=out_shape,
            grid_spec=pltpu.PrefetchScalarGridSpec(
                num_scalar_prefetch=0,
                grid=(grid_m, grid_ff),
                in_specs=[
                    pl.BlockSpec((tm, d_model), lambda i, j: (i, 0)),   # x
                    pl.BlockSpec((d_model, tff), lambda i, j: (0, j)),  # W1 col-blk
                    pl.BlockSpec((1, tff), lambda i, j: (0, j)),        # b1 chunk
                    pl.BlockSpec((tff, d_model), lambda i, j: (j, 0)),  # W2 row-blk
                    pl.BlockSpec((1, d_model), lambda i, j: (0, 0),
                                 pipeline_mode=pl.Buffered(1)),         # b2
                ],
                out_specs=pl.BlockSpec((tm, d_model), lambda i, j: (i, 0)),
                scratch_shapes=[pltpu.VMEM((tm, d_model), jnp.float32)],
            ),
            compiler_params=pltpu.CompilerParams(
                dimension_semantics=("parallel", "arbitrary"),
                vmem_limit_bytes=vmem_limit),
            cost_estimate=cost,
        )(x2d, w1p, b1p, w2p, b2p)

    return out2d.reshape(B, S, d_model)


def positionwise_feed_forward(x, w1p, b1p, w2p, b2p, *, tile_m=512,
                              out_dtype=None, max_resident_bytes=None):
    """x: [B, S, d_model]; params from prepare_ffn_params (call that once)."""
    out_dtype = jnp.dtype(out_dtype) if out_dtype is not None else x.dtype
    return _ffn_apply(x, w1p, b1p, w2p, b2p,
                      tile_m=int(tile_m), out_dtype=out_dtype,
                      vmem_limit=_vmem_limit_bytes(),
                      num_cores=_num_tensorcores(),
                      max_resident_bytes=max_resident_bytes)


def init_params(key, d_model, d_ff, dtype=jnp.float32):
    """Deterministic init matching nn.Linear default: U(-1/sqrt(fan_in), +)."""
    k1, k2, k3, k4 = jax.random.split(key, 4)
    bound1 = 1.0 / (d_model ** 0.5)
    bound2 = 1.0 / (d_ff ** 0.5)
    # stored pre-transposed relative to PyTorch's (out_features, in_features)
    w1 = jax.random.uniform(k1, (d_model, d_ff), dtype, -bound1, bound1)
    b1 = jax.random.uniform(k2, (d_ff,), dtype, -bound1, bound1)
    w2 = jax.random.uniform(k3, (d_ff, d_model), dtype, -bound2, bound2)
    b2 = jax.random.uniform(k4, (d_model,), dtype, -bound2, bound2)
    return w1, b1, w2, b2


if __name__ == "__main__":
    d_model, d_ff = 32, 64
    batch, seq = 2, 8

    key = jax.random.PRNGKey(0)
    kx, kp = jax.random.split(key)
    x = jax.random.normal(kx, (batch, seq, d_model), dtype=jnp.float32)
    w1, b1, w2, b2 = init_params(kp, d_model, d_ff)

    # high-precision reference (eval-mode dropout = identity)
    h_ref = jnp.maximum(
        jnp.dot(x, w1, precision=jax.lax.Precision.HIGHEST) + b1, 0.0)
    y_ref = jnp.dot(h_ref, w2, precision=jax.lax.Precision.HIGHEST) + b2

    # default path: bf16 MXU operands, f32 accumulation (recommended)
    params_bf16 = prepare_ffn_params(w1, b1, w2, b2)
    y = positionwise_feed_forward(x, *params_bf16)
    jax.block_until_ready(y)
    assert y.shape == (batch, seq, d_model)
    assert y.dtype == x.dtype
    assert jnp.allclose(y, y_ref, atol=2e-1, rtol=1e-1), "bf16 path mismatch"

    # f32-operand slow path: tight tolerance
    params_f32 = prepare_ffn_params(w1, b1, w2, b2, compute_dtype=jnp.float32)
    y32 = positionwise_feed_forward(x, *params_f32)
    jax.block_until_ready(y32)
    assert jnp.allclose(y32, y_ref, atol=1e-4, rtol=1e-4), "f32 path mismatch"

    # streamed-d_ff path (exercised by forcing a tiny resident-weight budget
    # on a d_ff that spans multiple 128-lane chunks)
    d_ff2 = 256
    w1b, b1b, w2b, b2b = init_params(kp, d_model, d_ff2)
    h2 = jnp.maximum(
        jnp.dot(x, w1b, precision=jax.lax.Precision.HIGHEST) + b1b, 0.0)
    y2_ref = jnp.dot(h2, w2b, precision=jax.lax.Precision.HIGHEST) + b2b
    params2 = prepare_ffn_params(w1b, b1b, w2b, b2b, compute_dtype=jnp.float32)
    y2 = positionwise_feed_forward(x, *params2, max_resident_bytes=50_000)
    jax.block_until_ready(y2)
    assert jnp.allclose(y2, y2_ref, atol=1e-4, rtol=1e-4), "streamed path mismatch"

    print("KERNEL_OK")
</pallas_src>

<mosaic_0001>
module attributes {stable_mosaic.version = 11 : i64} {
  func.func @_ffn_kernel_resident(%arg0: i32, %arg1: memref<16x32xf32, #tpu.memory_space<vmem>>, %arg2: memref<32x128xbf16, #tpu.memory_space<vmem>>, %arg3: memref<1x128xf32, #tpu.memory_space<vmem>>, %arg4: memref<128x32xbf16, #tpu.memory_space<vmem>>, %arg5: memref<1x32xf32, #tpu.memory_space<vmem>>, %arg6: memref<16x32xf32, #tpu.memory_space<vmem>>) attributes {dimension_semantics = [#tpu.dimension_semantics<parallel>], iteration_bounds = array<i64: 1>, scalar_prefetch = 0 : i64, scratch_operands = 0 : i64, tpu.core_type = #tpu.core_type<tc>, window_params = [{transform_indices = @transform_0, window_bounds = array<i64: 16, 32>}, {pipeline_mode = #tpu.pipeline_mode<synchronous>, transform_indices = @transform_1, window_bounds = array<i64: 32, 128>}, {pipeline_mode = #tpu.pipeline_mode<synchronous>, transform_indices = @transform_2, window_bounds = array<i64: 1, 128>}, {pipeline_mode = #tpu.pipeline_mode<synchronous>, transform_indices = @transform_3, window_bounds = array<i64: 128, 32>}, {pipeline_mode = #tpu.pipeline_mode<synchronous>, transform_indices = @transform_4, window_bounds = array<i64: 1, 32>}, {transform_indices = @transform_5, window_bounds = array<i64: 16, 32>}]} {
    %c0 = arith.constant 0 : index
    %c0_0 = arith.constant 0 : index
    %0 = vector.load %arg1[%c0, %c0_0] : memref<16x32xf32, #tpu.memory_space<vmem>>, vector<16x32xf32>
    %1 = arith.truncf %0 : vector<16x32xf32> to vector<16x32xbf16>
    %c0_1 = arith.constant 0 : index
    %c0_2 = arith.constant 0 : index
    %2 = vector.load %arg2[%c0_1, %c0_2] : memref<32x128xbf16, #tpu.memory_space<vmem>>, vector<32x128xbf16>
    %cst = arith.constant dense<0.000000e+00> : vector<16x128xf32>
    %3 = tpu.matmul %1, %2, %cst {dimension_numbers = #tpu.dot_dimension_numbers<[1], [0], [0], [1], [0, 0, 1, 1], [], []>} : vector<16x32xbf16>, vector<32x128xbf16>, vector<16x128xf32> -> vector<16x128xf32>
    %c0_3 = arith.constant 0 : index
    %c0_4 = arith.constant 0 : index
    %4 = vector.load %arg3[%c0_3, %c0_4] : memref<1x128xf32, #tpu.memory_space<vmem>>, vector<1x128xf32>
    %5 = vector.broadcast %4 : vector<1x128xf32> to vector<16x128xf32>
    %6 = arith.addf %3, %5 : vector<16x128xf32>
    %cst_5 = arith.constant 0.000000e+00 : f32
    %7 = vector.broadcast %cst_5 : f32 to vector<16x128xf32>
    %8 = arith.maximumf %6, %7 : vector<16x128xf32>
    %9 = arith.truncf %8 : vector<16x128xf32> to vector<16x128xbf16>
    %c0_6 = arith.constant 0 : index
    %c0_7 = arith.constant 0 : index
    %10 = vector.load %arg4[%c0_6, %c0_7] : memref<128x32xbf16, #tpu.memory_space<vmem>>, vector<128x32xbf16>
    %cst_8 = arith.constant dense<0.000000e+00> : vector<16x32xf32>
    %11 = tpu.matmul %9, %10, %cst_8 {dimension_numbers = #tpu.dot_dimension_numbers<[1], [0], [0], [1], [0, 0, 1, 1], [], []>} : vector<16x128xbf16>, vector<128x32xbf16>, vector<16x32xf32> -> vector<16x32xf32>
    %c0_9 = arith.constant 0 : index
    %c0_10 = arith.constant 0 : index
    %12 = vector.load %arg5[%c0_9, %c0_10] : memref<1x32xf32, #tpu.memory_space<vmem>>, vector<1x32xf32>
    %13 = vector.broadcast %12 : vector<1x32xf32> to vector<16x32xf32>
    %14 = arith.addf %11, %13 : vector<16x32xf32>
    %c0_11 = arith.constant 0 : index
    %c0_12 = arith.constant 0 : index
    %15 = vector.load %arg6[%c0_11, %c0_12] : memref<16x32xf32, #tpu.memory_space<vmem>>, vector<16x32xf32>
    tpu.vector_store %arg6[%c0_11, %c0_12], %14 {strides = array<i32>} : memref<16x32xf32, #tpu.memory_space<vmem>>, vector<16x32xf32>,
    return
  }
  func.func @transform_0(%arg0: i32) -> (i32, i32) {
    %c0_i32 = arith.constant 0 : i32
    %c0_i32_0 = arith.constant 0 : i32
    return %arg0, %c0_i32 : i32, i32
  }
  func.func @transform_1(%arg0: i32) -> (i32, i32) {
    %c0_i32 = arith.constant 0 : i32
    %c0_i32_0 = arith.constant 0 : i32
    %c0_i32_1 = arith.constant 0 : i32
    return %c0_i32, %c0_i32_0 : i32, i32
  }
  func.func @transform_2(%arg0: i32) -> (i32, i32) {
    %c0_i32 = arith.constant 0 : i32
    %c0_i32_0 = arith.constant 0 : i32
    %c0_i32_1 = arith.constant 0 : i32
    return %c0_i32, %c0_i32_0 : i32, i32
  }
  func.func @transform_3(%arg0: i32) -> (i32, i32) {
    %c0_i32 = arith.constant 0 : i32
    %c0_i32_0 = arith.constant 0 : i32
    %c0_i32_1 = arith.constant 0 : i32
    return %c0_i32, %c0_i32_0 : i32, i32
  }
  func.func @transform_4(%arg0: i32) -> (i32, i32) {
    %c0_i32 = arith.constant 0 : i32
    %c0_i32_0 = arith.constant 0 : i32
    %c0_i32_1 = arith.constant 0 : i32
    return %c0_i32, %c0_i32_0 : i32, i32
  }
  func.func @transform_5(%arg0: i32) -> (i32, i32) {
    %c0_i32 = arith.constant 0 : i32
    %c0_i32_0 = arith.constant 0 : i32
    return %arg0, %c0_i32 : i32, i32
  }
}

</mosaic_0001>

<llo_original>
// kernel: _ffn_apply.1
$region0: #{_ffn_apply.1}
  #allocation0 [shape = 'u32[]', space=smem, size = 0x4, offset = 0x4, fixed_abs, tag = 'smem constant byte address 0x4 - core index']
  #allocation1 [shape = 'u32[144,128]{1,0:T(1,128)}', space=vmem, size = 0x12000, scoped, tag = 'internal scratch']
  %s0 = inlined_call_operand.vmem [shape: f32[16,32], index: 0, kind: input, shape index: {}]
  %s1 = inlined_call_operand.vmem [shape: bf16[32,128], index: 1, kind: input, shape index: {}]
  %s2 = inlined_call_operand.vmem [shape: f32[1,128], index: 2, kind: input, shape index: {}]
  %s3 = inlined_call_operand.vmem [shape: bf16[128,32], index: 3, kind: input, shape index: {}]
  %s4 = inlined_call_operand.vmem [shape: f32[1,32], index: 4, kind: input, shape index: {}]
  %s5 = inlined_call_operand.hbm [shape: f32[16,32], index: 5, kind: output, shape index: {}]
  %s6 = sld [smem:[#allocation0]]
  $region30: #{_ffn_apply.1} parent=0
    _
  %s8 = ssub.s32 1, %s6
  %s9 = scalar_select 0, %s8, %s6
  $region1: #{_ffn_apply.1} parent=0
    #allocation2 [shape = 'u8[8192]{0}', space=vmem, size = 0x2000, scoped, tag = 'output window, operand 0, single buffered']
    #allocation3 [shape = 's32[1]{0}', space=sflag, size = 0x4, scoped, tag = 'scoped memory for _ffn_apply.1']
    %10 = vsyncpa [#allocation3], 0
    // Predicated region
    $region2: #{_ffn_apply.1} parent=1 // pred_check
      _
    $region3: #{_ffn_apply.1} parent=1 // pred_check_branch
      %12 = sbr.rel (0) target = $region5
    $region4: #{_ffn_apply.1} parent=1 // pred_region
      _
    $region5: #{_ffn_apply.1} parent=1 // pred_fallthru
      _
    // Predicated region
    $region6: #{_ffn_apply.1} parent=1 // pred_check
      _
    $region7: #{_ffn_apply.1} parent=1 // pred_check_branch
      %14 = sbr.rel (0) target = $region9
    $region8: #{_ffn_apply.1} parent=1 // pred_region
      _
    $region9: #{_ffn_apply.1} parent=1 // pred_fallthru
      _
    // Predicated region
    $region10: #{_ffn_apply.1} parent=1 // pred_check
      _
    $region11: #{_ffn_apply.1} parent=1 // pred_check_branch
      %16 = sbr.rel (0) target = $region13
    $region12: #{_ffn_apply.1} parent=1 // pred_region
      _
    $region13: #{_ffn_apply.1} parent=1 // pred_fallthru
      _
    // Predicated region
    $region14: #{_ffn_apply.1} parent=1 // pred_check
      _
    $region15: #{_ffn_apply.1} parent=1 // pred_check_branch
      %18 = sbr.rel (0) target = $region17
    $region16: #{_ffn_apply.1} parent=1 // pred_region
      _
    $region17: #{_ffn_apply.1} parent=1 // pred_fallthru
      _
    // Predicated region
    $region18: #{_ffn_apply.1} parent=1 // pred_check
      _
    $region19: #{_ffn_apply.1} parent=1 // pred_check_branch
      %20 = sbr.rel (0) target = $region21
    $region20: #{_ffn_apply.1} parent=1 // pred_region
      _
    $region21: #{_ffn_apply.1} parent=1 // pred_fallthru
      _
    %v22 = vld [vmem:[%s0] sm:$0xff]
    %v23 = vld [vmem:[%s0 + $0x8] sm:$0xff]
    %v24 = vpack.c.bf16 %v23, %v22
    %v25 = vld [vmem:[%s1] sm:$0xf]
    %v26 = vld [vmem:[%s1 + $0x4] sm:$0xf]
    %v27 = vld [vmem:[%s1 + $0x8] sm:$0xf]
    %v28 = vld [vmem:[%s1 + $0xc] sm:$0xf]
    %v29 = vld [vmem:[%s2] sm:$0x1]
    %v31 = vlaneseq
    %v32 = vshrl.u32 %v31, 7
    %v33 = vsub.s32 0, %v32
    %v34 = vrot.slane %v29, %v33
    %v40 = vunpack.c.l.b16 %v25
    %v41 = vunpack.c.l.b16 %v26
    %v42 = vunpack.c.l.b16 %v27
    %v43 = vunpack.c.l.b16 %v28
    %v44 = vpack.c.b16 %v41, %v40
    %v45 = vpack.c.b16 %v43, %v42
    %vm48 = vcmask 261120
    %v50 = vsel %vm48, %v24, 0
    %52 = vmatprep.subr.bf16.mxu0 0
    %53 = vmatpush1.bf16.msra.mxu0 %v44
    %54 = vmatprep.subr.bf16.mxu0 0
    %55 = vmatpush1.bf16.msra.mxu0 %v45
    %56 = vmatprep.subr.bf16.mxu0 0
    %57 = vmatpush1.bf16.msra.mxu0 0
    %58 = vmatprep.subr.bf16.mxu0 0
    %59 = vmatpush1.bf16.msra.mxu0 0
    %60 = vmatprep.subr.bf16.mxu0 0
    %61 = vmatpush1.bf16.msra.mxu0 0
    %62 = vmatprep.subr.bf16.mxu0 0
    %63 = vmatpush1.bf16.msra.mxu0 0
    %64 = vmatprep.subr.bf16.mxu0 0
    %65 = vmatpush1.bf16.msra.mxu0 0
    %66 = vmatprep.subr.bf16.mxu0 0
    %67 = vmatpush1.bf16.msra.mxu0 0
    %68 = vmatprep.subr.bf16.mxu0 0
    %69 = vmatpush1.bf16.msra.mxu0 0
    %70 = vmatprep.subr.bf16.mxu0 0
    %71 = vmatpush1.bf16.msra.mxu0 0
    %72 = vmatprep.subr.bf16.mxu0 0
    %73 = vmatpush1.bf16.msra.mxu0 0
    %74 = vmatprep.subr.bf16.mxu0 0
    %75 = vmatpush1.bf16.msra.mxu0 0
    %76 = vmatprep.subr.bf16.mxu0 0
    %77 = vmatpush1.bf16.msra.mxu0 0
    %78 = vmatprep.subr.bf16.mxu0 0
    %79 = vmatpush1.bf16.msra.mxu0 0
    %80 = vmatprep.subr.bf16.mxu0 0
    %81 = vmatpush1.bf16.msra.mxu0 0
    %82 = vmatprep.subr.bf16.mxu0 0
    %83 = vmatpush1.bf16.msra.mxu0 0
    %84 = vmatprep.mubr.bf16.mxu0 0
    %85 = vmatmul.mubr.bf16.gmra.mrb[0].mxu0 %v50
    %v86 = vpop.f32.mrb[0].mxu0
    %v87 = vadd.f32 %v34, %v86
    %v88 = vpop.f32.mrb[0].mxu0
    %v89 = vpop.f32.mrb[0].mxu0
    %v90 = vadd.f32 %v34, %v89
    %v91 = vpop.f32.mrb[0].mxu0
    %92 = vdwg.mxu0
    %v93 = vmax.f32 %v87, 0.0
    %v94 = vmax.f32 %v90, 0.0
    %v95 = vpack.c.bf16 %v94, %v93
    %v96 = vld [vmem:[%s3] sm:$0xf]
    %v97 = vld [vmem:[%s3 + $0x4] sm:$0xf]
    %v98 = vld [vmem:[%s3 + $0x8] sm:$0xf]
    %v99 = vld [vmem:[%s3 + $0xc] sm:$0xf]
    %v100 = vld [vmem:[%s3 + $0x10] sm:$0xf]
    %v101 = vld [vmem:[%s3 + $0x14] sm:$0xf]
    %v102 = vld [vmem:[%s3 + $0x18] sm:$0xf]
    %v103 = vld [vmem:[%s3 + $0x1c] sm:$0xf]
    %v104 = vld [vmem:[%s3 + $0x20] sm:$0xf]
    %v105 = vld [vmem:[%s3 + $0x24] sm:$0xf]
    %v106 = vld [vmem:[%s3 + $0x28] sm:$0xf]
    %v107 = vld [vmem:[%s3 + $0x2c] sm:$0xf]
    %v108 = vld [vmem:[%s3 + $0x30] sm:$0xf]
    %v109 = vld [vmem:[%s3 + $0x34] sm:$0xf]
    %v110 = vld [vmem:[%s3 + $0x38] sm:$0xf]
    %v111 = vld [vmem:[%s3 + $0x3c] sm:$0xf]
    %v112 = vld [vmem:[%s4] sm:$0x1]
    %v114 = vlaneseq
    %v115 = vshrl.u32 %v114, 7
    %v116 = vsub.s32 0, %v115
    %v117 = vrot.slane %v112, %v116
    %v135 = vunpack.c.l.b16 %v96
    %v136 = vunpack.c.l.b16 %v97
    %v137 = vunpack.c.l.b16 %v98
    %v138 = vunpack.c.l.b16 %v99
    %v139 = vunpack.c.l.b16 %v100
    %v140 = vunpack.c.l.b16 %v101
    %v141 = vunpack.c.l.b16 %v102
    %v142 = vunpack.c.l.b16 %v103
    %v143 = vunpack.c.l.b16 %v104
    %v144 = vunpack.c.l.b16 %v105
    %v145 = vunpack.c.l.b16 %v106
    %v146 = vunpack.c.l.b16 %v107
    %v147 = vunpack.c.l.b16 %v108
    %v148 = vunpack.c.l.b16 %v109
    %v149 = vunpack.c.l.b16 %v110
    %v150 = vunpack.c.l.b16 %v111
    %v151 = vpack.c.b16 %v136, %v135
    %v152 = vpack.c.b16 %v138, %v137
    %v153 = vpack.c.b16 %v140, %v139
    %v154 = vpack.c.b16 %v142, %v141
    %v155 = vpack.c.b16 %v144, %v143
    %v156 = vpack.c.b16 %v146, %v145
    %v157 = vpack.c.b16 %v148, %v147
    %v158 = vpack.c.b16 %v150, %v149
    %167 = vmatprep.subr.bf16.mxu0 0
    %168 = vmatpush1.bf16.msra.mxu0 %v151
    %169 = vmatprep.subr.bf16.mxu0 0
    %170 = vmatpush1.bf16.msra.mxu0 %v152
    %171 = vmatprep.subr.bf16.mxu0 0
    %172 = vmatpush1.bf16.msra.mxu0 %v153
    %173 = vmatprep.subr.bf16.mxu0 0
    %174 = vmatpush1.bf16.msra.mxu0 %v154
    %175 = vmatprep.subr.bf16.mxu0 0
    %176 = vmatpush1.bf16.msra.mxu0 %v155
    %177 = vmatprep.subr.bf16.mxu0 0
    %178 = vmatpush1.bf16.msra.mxu0 %v156
    %179 = vmatprep.subr.bf16.mxu0 0
    %180 = vmatpush1.bf16.msra.mxu0 %v157
    %181 = vmatprep.subr.bf16.mxu0 0
    %182 = vmatpush1.bf16.msra.mxu0 %v158
    %183 = vmatprep.subr.bf16.mxu0 0
    %184 = vmatpush1.bf16.msra.mxu0 0
    %185 = vmatprep.subr.bf16.mxu0 0
    %186 = vmatpush1.bf16.msra.mxu0 0
    %187 = vmatprep.subr.bf16.mxu0 0
    %188 = vmatpush1.bf16.msra.mxu0 0
    %189 = vmatprep.subr.bf16.mxu0 0
    %190 = vmatpush1.bf16.msra.mxu0 0
    %191 = vmatprep.subr.bf16.mxu0 0
    %192 = vmatpush1.bf16.msra.mxu0 0
    %193 = vmatprep.subr.bf16.mxu0 0
    %194 = vmatpush1.bf16.msra.mxu0 0
    %195 = vmatprep.subr.bf16.mxu0 0
    %196 = vmatpush1.bf16.msra.mxu0 0
    %197 = vmatprep.subr.bf16.mxu0 0
    %198 = vmatpush1.bf16.msra.mxu0 0
    %199 = vmatprep.mubr.bf16.mxu0 0
    %200 = vmatmul.mubr.bf16.gmra.mrb[0].mxu0 %v95
    %v201 = vpop.f32.mrb[0].mxu0
    %v202 = vadd.f32 %v117, %v201
    %v203 = vpop.f32.mrb[0].mxu0
    %v204 = vpop.f32.mrb[0].mxu0
    %v205 = vadd.f32 %v117, %v204
    %v206 = vpop.f32.mrb[0].mxu0
    %207 = vdwg.mxu0
    %208 = vst.msk [vmem:[#allocation2] sm:$0xff] %vm48, %v202
    %209 = vst.msk [vmem:[#allocation2 + $0x8] sm:$0xff] %vm48, %v205
    // Predicated region
    $region22: #{_ffn_apply.1} parent=1 // pred_check
      _
    $region23: #{_ffn_apply.1} parent=1 // pred_check_branch
      %211 = sbr.rel (0) target = $region25
    $region24: #{_ffn_apply.1} parent=1 // pred_region
      %s213 = ssub.s32 256, 256
      %214 = vsyncadd [#allocation3], %s213
      %s215 = sshll.u32 [#allocation2], 4
      %s216 = int_to_ptr.vmem [resolvable:$true] %s215
      %221 = dma.vmem_to_hbm [thread:$0]  %s216, 256, %s5, [#allocation3], 128, 128, 8
    $region25: #{_ffn_apply.1} parent=1 // pred_fallthru
      _
    // Predicated region
    $region26: #{_ffn_apply.1} parent=1 // pred_check
      _
    $region27: #{_ffn_apply.1} parent=1 // pred_check_branch
      %223 = sbr.rel (0) target = $region29
    $region28: #{_ffn_apply.1} parent=1 // pred_region
      %224 = dma.done [#allocation3], 256
    $region29: #{_ffn_apply.1} parent=1 // pred_fallthru
      _
    %225 = vsyncpa [#allocation3], 1

</llo_original>
